<compile_context>
chip_gen: v7x
topology: tpu7x:2x2x1
jax: 0.10.0
libtpu: 0.0.40
codegen_flags: <defaults>
</compile_context>

<pallas_src>
import jax
import jax.numpy as jnp
from jax.experimental import pallas as pl
from jax.experimental.pallas import tpu as pltpu

LANES = 128
MAX_BLOCK_ROWS = 1024  # 1024x128 f32 = 512 KiB per operand per pipeline buffer


def _make_kernel(rows, block_rows, inner, needs_row_mask):
    def kernel(pred_ref, true_ref, mask_ref, sumsq_ref, count_ref,
               acc_sq, acc_cnt):
        c = pl.program_id(0)   # TensorCore shard (parallel)
        i = pl.program_id(1)   # chunk within shard (arbitrary / reduction)

        @pl.when(i == 0)
        def _init():
            acc_sq[...] = jnp.zeros_like(acc_sq)
            acc_cnt[...] = jnp.zeros_like(acc_cnt)

        valid = mask_ref[...] != 0
        if needs_row_mask:
            # Mask out rows past the logical end: ragged last block, or a
            # duplicated (clamped) block when the chunk count is odd.
            blk = c * inner + i  # unclamped logical block index
            row_ids = (jax.lax.broadcasted_iota(jnp.int32,
                                                (block_rows, LANES), 0)
                       + blk * block_rows)
            valid = valid & (row_ids < rows)

        d = (pred_ref[...].astype(jnp.float32)
             - true_ref[...].astype(jnp.float32))
        acc_sq[...] += jnp.where(valid, d * d, 0.0)
        acc_cnt[...] += valid.astype(jnp.float32)

        @pl.when(i == pl.num_programs(1) - 1)
        def _finalize():
            sumsq_ref[...] = jnp.broadcast_to(jnp.sum(acc_sq[...]), (1, LANES))
            count_ref[...] = jnp.broadcast_to(jnp.sum(acc_cnt[...]), (1, LANES))

    return kernel


def masked_mse_loss(y_pred, y_true, mask, reduction: str = "mean"):
    """Equivalent of MaskedMSELoss.forward with reduction='mean'.

    mask: boolean tensor, same shape as y_pred / y_true.
    Returns scalar float32 mean of (y_pred - y_true)^2 over mask==True.
    0/0 -> NaN on an all-False mask (matches torch's MSELoss on empty input).
    """
    if reduction != "mean":
        # TODO(synk): reduction='none' returns a (num_active,)-sized tensor
        # (data-dependent shape from masked_select); no clean static-shape
        # Pallas/JAX equivalent, so only 'mean' is implemented.
        raise NotImplementedError("only reduction='mean' is supported")

    pred_flat = y_pred.reshape(-1)                    # keep original dtype
    true_flat = y_true.reshape(-1)
    mask_flat = mask.reshape(-1).astype(jnp.int8)     # 1 B/elem, not f32

    n = pred_flat.shape[0]
    lane_pad = (-n) % LANES
    if lane_pad:
        # Only the sub-128 lane tail is padded (padded mask = 0 -> ignored).
        # The common case (n % 128 == 0, as in the example) pays nothing.
        pred_flat = jnp.pad(pred_flat, (0, lane_pad))
        true_flat = jnp.pad(true_flat, (0, lane_pad))
        mask_flat = jnp.pad(mask_flat, (0, lane_pad))

    rows = pred_flat.shape[0] // LANES
    pred2d = pred_flat.reshape(rows, LANES)
    true2d = true_flat.reshape(rows, LANES)
    mask2d = mask_flat.reshape(rows, LANES)

    block_rows = rows if rows <= MAX_BLOCK_ROWS else MAX_BLOCK_ROWS
    num_blocks = -(-rows // block_rows)
    ncores = 2 if num_blocks >= 2 else 1      # shard across both TCs on v7x
    inner = -(-num_blocks // ncores)
    needs_row_mask = (num_blocks * block_rows != rows) or \
                     (inner * ncores != num_blocks)

    def data_map(c, i):
        # Clamp so an out-of-range chunk re-reads the last valid block; its
        # contribution is zeroed in-kernel by the row mask.
        return (jnp.minimum(c * inner + i, num_blocks - 1), 0)

    data_spec = pl.BlockSpec((block_rows, LANES), data_map)
    out_spec = pl.BlockSpec((1, LANES), lambda c, i: (0, c))

    kernel = _make_kernel(rows, block_rows, inner, needs_row_mask)

    sumsq, count = pl.pallas_call(
        kernel,
        out_shape=(
            jax.ShapeDtypeStruct((1, ncores * LANES), jnp.float32),
            jax.ShapeDtypeStruct((1, ncores * LANES), jnp.float32),
        ),
        grid_spec=pltpu.PrefetchScalarGridSpec(
            num_scalar_prefetch=0,
            grid=(ncores, inner),
            in_specs=[data_spec, data_spec, data_spec],
            out_specs=(out_spec, out_spec),
            scratch_shapes=[
                pltpu.VMEM((block_rows, LANES), jnp.float32),
                pltpu.VMEM((block_rows, LANES), jnp.float32),
            ],
        ),
        compiler_params=pltpu.CompilerParams(
            dimension_semantics=("parallel", "arbitrary"),
        ),
    )(pred2d, true2d, mask2d)

    # Each core's partial is replicated across its 128-lane block; take lane 0
    # of each core block and combine.
    total_sq = jnp.sum(sumsq.reshape(ncores, LANES)[:, 0])
    total_cnt = jnp.sum(count.reshape(ncores, LANES)[:, 0])
    return (total_sq / total_cnt).astype(jnp.float32)


if __name__ == "__main__":
    key = jax.random.PRNGKey(0)
    k1, k2, k3 = jax.random.split(key, 3)

    shape = (2, 4, 16, 16)
    y_pred = jax.random.normal(k1, shape, dtype=jnp.float32)
    y_true = jax.random.normal(k2, shape, dtype=jnp.float32)
    mask = jax.random.bernoulli(k3, p=0.5, shape=shape)

    loss = masked_mse_loss(y_pred, y_true, mask)
    loss = jax.block_until_ready(loss)

    # reference check in plain JAX
    m = mask.astype(jnp.float32)
    ref = jnp.sum(((y_pred - y_true) ** 2) * m) / jnp.sum(m)
    assert jnp.allclose(loss, ref, rtol=1e-5, atol=1e-6), (loss, ref)

    print("KERNEL_OK")
</pallas_src>

<mosaic_0001>
module attributes {stable_mosaic.version = 11 : i64} {
  func.func @kernel(%arg0: i32, %arg1: i32, %arg2: memref<16x128xf32, #tpu.memory_space<vmem>>, %arg3: memref<16x128xf32, #tpu.memory_space<vmem>>, %arg4: memref<16x128xi8, #tpu.memory_space<vmem>>, %arg5: memref<1x128xf32, #tpu.memory_space<vmem>>, %arg6: memref<1x128xf32, #tpu.memory_space<vmem>>, %arg7: memref<16x128xf32, #tpu.memory_space<vmem>>, %arg8: memref<16x128xf32, #tpu.memory_space<vmem>>) attributes {dimension_semantics = [#tpu.dimension_semantics<parallel>, #tpu.dimension_semantics<arbitrary>], iteration_bounds = array<i64: 1, 1>, scalar_prefetch = 0 : i64, scratch_operands = 2 : i64, tpu.core_type = #tpu.core_type<tc>, window_params = [{transform_indices = @transform_0, window_bounds = array<i64: 16, 128>}, {transform_indices = @transform_1, window_bounds = array<i64: 16, 128>}, {transform_indices = @transform_2, window_bounds = array<i64: 16, 128>}, {transform_indices = @transform_3, window_bounds = array<i64: 1, 128>}, {transform_indices = @transform_4, window_bounds = array<i64: 1, 128>}]} {
    %c0_i32 = arith.constant 0 : i32
    %0 = arith.cmpi eq, %arg1, %c0_i32 : i32
    %1 = arith.extui %0 : i1 to i32
    %c0_i32_0 = arith.constant 0 : i32
    %2 = arith.cmpi ne, %1, %c0_i32_0 : i32
    scf.if %2 {
      %cst_16 = arith.constant 0.000000e+00 : f32
      %23 = vector.broadcast %cst_16 : f32 to vector<16x128xf32>
      %c0_17 = arith.constant 0 : index
      %c0_18 = arith.constant 0 : index
      %24 = vector.load %arg7[%c0_17, %c0_18] : memref<16x128xf32, #tpu.memory_space<vmem>>, vector<16x128xf32>
      tpu.vector_store %arg7[%c0_17, %c0_18], %23 {strides = array<i32>} : memref<16x128xf32, #tpu.memory_space<vmem>>, vector<16x128xf32>,
      %cst_19 = arith.constant 0.000000e+00 : f32
      %25 = vector.broadcast %cst_19 : f32 to vector<16x128xf32>
      %c0_20 = arith.constant 0 : index
      %c0_21 = arith.constant 0 : index
      %26 = vector.load %arg8[%c0_20, %c0_21] : memref<16x128xf32, #tpu.memory_space<vmem>>, vector<16x128xf32>
      tpu.vector_store %arg8[%c0_20, %c0_21], %25 {strides = array<i32>} : memref<16x128xf32, #tpu.memory_space<vmem>>, vector<16x128xf32>,
    } else {
    }
    %c0 = arith.constant 0 : index
    %c0_1 = arith.constant 0 : index
    %3 = vector.load %arg4[%c0, %c0_1] : memref<16x128xi8, #tpu.memory_space<vmem>>, vector<16x128xi8>
    %c0_i8 = arith.constant 0 : i8
    %4 = vector.broadcast %c0_i8 : i8 to vector<16x128xi8>
    %5 = arith.cmpi ne, %3, %4 : vector<16x128xi8>
    %c0_2 = arith.constant 0 : index
    %c0_3 = arith.constant 0 : index
    %6 = vector.load %arg2[%c0_2, %c0_3] : memref<16x128xf32, #tpu.memory_space<vmem>>, vector<16x128xf32>
    %c0_4 = arith.constant 0 : index
    %c0_5 = arith.constant 0 : index
    %7 = vector.load %arg3[%c0_4, %c0_5] : memref<16x128xf32, #tpu.memory_space<vmem>>, vector<16x128xf32>
    %8 = arith.subf %6, %7 : vector<16x128xf32>
    %c0_6 = arith.constant 0 : index
    %c0_7 = arith.constant 0 : index
    %9 = vector.load %arg7[%c0_6, %c0_7] : memref<16x128xf32, #tpu.memory_space<vmem>>, vector<16x128xf32>
    %10 = arith.mulf %8, %8 : vector<16x128xf32>
    %cst = arith.constant 0.000000e+00 : f32
    %11 = vector.broadcast %cst : f32 to vector<16x128xf32>
    %12 = arith.select %5, %10, %11 : vector<16x128xi1>, vector<16x128xf32>
    %13 = arith.addf %9, %12 : vector<16x128xf32>
    %c0_8 = arith.constant 0 : index
    %c0_9 = arith.constant 0 : index
    %14 = vector.load %arg7[%c0_8, %c0_9] : memref<16x128xf32, #tpu.memory_space<vmem>>, vector<16x128xf32>
    tpu.vector_store %arg7[%c0_8, %c0_9], %13 {strides = array<i32>} : memref<16x128xf32, #tpu.memory_space<vmem>>, vector<16x128xf32>,
    %c0_10 = arith.constant 0 : index
    %c0_11 = arith.constant 0 : index
    %15 = vector.load %arg8[%c0_10, %c0_11] : memref<16x128xf32, #tpu.memory_space<vmem>>, vector<16x128xf32>
    %16 = arith.extui %5 : vector<16x128xi1> to vector<16x128xi32>
    %17 = arith.sitofp %16 : vector<16x128xi32> to vector<16x128xf32>
    %18 = arith.addf %15, %17 : vector<16x128xf32>
    %c0_12 = arith.constant 0 : index
    %c0_13 = arith.constant 0 : index
    %19 = vector.load %arg8[%c0_12, %c0_13] : memref<16x128xf32, #tpu.memory_space<vmem>>, vector<16x128xf32>
    tpu.vector_store %arg8[%c0_12, %c0_13], %18 {strides = array<i32>} : memref<16x128xf32, #tpu.memory_space<vmem>>, vector<16x128xf32>,
    %c0_i32_14 = arith.constant 0 : i32
    %20 = arith.cmpi eq, %arg1, %c0_i32_14 : i32
    %21 = arith.extui %20 : i1 to i32
    %c0_i32_15 = arith.constant 0 : i32
    %22 = arith.cmpi ne, %21, %c0_i32_15 : i32
    scf.if %22 {
      %c0_16 = arith.constant 0 : index
      %c0_17 = arith.constant 0 : index
      %23 = vector.load %arg7[%c0_16, %c0_17] : memref<16x128xf32, #tpu.memory_space<vmem>>, vector<16x128xf32>
      %24 = vector.shape_cast %23 : vector<16x128xf32> to vector<1x16x128xf32>
      %cst_18 = arith.constant dense<0.000000e+00> : vector<1xf32>
      %25 = vector.multi_reduction <add>, %24, %cst_18 [1, 2] : vector<1x16x128xf32> to vector<1xf32>
      %26 = vector.shape_cast %25 : vector<1xf32> to vector<1x1x1xf32>
      %27 = vector.extract %26[0, 0, 0] : f32 from vector<1x1x1xf32>
      %28 = vector.broadcast %27 : f32 to vector<1x128xf32>
      %c0_19 = arith.constant 0 : index
      %c0_20 = arith.constant 0 : index
      %29 = vector.load %arg5[%c0_19, %c0_20] : memref<1x128xf32, #tpu.memory_space<vmem>>, vector<1x128xf32>
      tpu.vector_store %arg5[%c0_19, %c0_20], %28 {strides = array<i32>} : memref<1x128xf32, #tpu.memory_space<vmem>>, vector<1x128xf32>,
      %c0_21 = arith.constant 0 : index
      %c0_22 = arith.constant 0 : index
      %30 = vector.load %arg8[%c0_21, %c0_22] : memref<16x128xf32, #tpu.memory_space<vmem>>, vector<16x128xf32>
      %31 = vector.shape_cast %30 : vector<16x128xf32> to vector<1x16x128xf32>
      %cst_23 = arith.constant dense<0.000000e+00> : vector<1xf32>
      %32 = vector.multi_reduction <add>, %31, %cst_23 [1, 2] : vector<1x16x128xf32> to vector<1xf32>
      %33 = vector.shape_cast %32 : vector<1xf32> to vector<1x1x1xf32>
      %34 = vector.extract %33[0, 0, 0] : f32 from vector<1x1x1xf32>
      %35 = vector.broadcast %34 : f32 to vector<1x128xf32>
      %c0_24 = arith.constant 0 : index
      %c0_25 = arith.constant 0 : index
      %36 = vector.load %arg6[%c0_24, %c0_25] : memref<1x128xf32, #tpu.memory_space<vmem>>, vector<1x128xf32>
      tpu.vector_store %arg6[%c0_24, %c0_25], %35 {strides = array<i32>} : memref<1x128xf32, #tpu.memory_space<vmem>>, vector<1x128xf32>,
    } else {
    }
    return
  }
  func.func @transform_0(%arg0: i32, %arg1: i32) -> (i32, i32) {
    %c1_i32 = arith.constant 1 : i32
    %0 = arith.muli %arg0, %c1_i32 : i32
    %1 = arith.addi %0, %arg1 : i32
    %c0_i32 = arith.constant 0 : i32
    %2 = arith.minsi %1, %c0_i32 : i32
    %c0_i32_0 = arith.constant 0 : i32
    %c0_i32_1 = arith.constant 0 : i32
    return %2, %c0_i32_0 : i32, i32
  }
  func.func @transform_1(%arg0: i32, %arg1: i32) -> (i32, i32) {
    %c1_i32 = arith.constant 1 : i32
    %0 = arith.muli %arg0, %c1_i32 : i32
    %1 = arith.addi %0, %arg1 : i32
    %c0_i32 = arith.constant 0 : i32
    %2 = arith.minsi %1, %c0_i32 : i32
    %c0_i32_0 = arith.constant 0 : i32
    %c0_i32_1 = arith.constant 0 : i32
    return %2, %c0_i32_0 : i32, i32
  }
  func.func @transform_2(%arg0: i32, %arg1: i32) -> (i32, i32) {
    %c1_i32 = arith.constant 1 : i32
    %0 = arith.muli %arg0, %c1_i32 : i32
    %1 = arith.addi %0, %arg1 : i32
    %c0_i32 = arith.constant 0 : i32
    %2 = arith.minsi %1, %c0_i32 : i32
    %c0_i32_0 = arith.constant 0 : i32
    %c0_i32_1 = arith.constant 0 : i32
    return %2, %c0_i32_0 : i32, i32
  }
  func.func @transform_3(%arg0: i32, %arg1: i32) -> (i32, i32) {
    %c0_i32 = arith.constant 0 : i32
    %c0_i32_0 = arith.constant 0 : i32
    return %c0_i32, %arg0 : i32, i32
  }
  func.func @transform_4(%arg0: i32, %arg1: i32) -> (i32, i32) {
    %c0_i32 = arith.constant 0 : i32
    %c0_i32_0 = arith.constant 0 : i32
    return %c0_i32, %arg0 : i32, i32
  }
}

</mosaic_0001>

<llo_original>
// kernel: tpu_custom_call.1
$region0: #{tpu_custom_call.1}
  #allocation0 [shape = 'u32[]', space=smem, size = 0x4, offset = 0x4, fixed_abs, tag = 'smem constant byte address 0x4 - core index']
  #allocation1 [shape = 'u32[144,128]{1,0:T(1,128)}', space=vmem, size = 0x12000, scoped, tag = 'internal scratch']
  #allocation2 [shape = 'f32[16,128]{1,0:T(8,128)}', space=vmem, size = 0x2000, scoped, tag = 'scratch operand']
  #allocation3 [shape = 'f32[16,128]{1,0:T(8,128)}', space=vmem, size = 0x2000, scoped, tag = 'scratch operand']
  %s0 = inlined_call_operand.hbm [shape: f32[16,128], index: 0, kind: input, shape index: {}]
  %s1 = inlined_call_operand.hbm [shape: f32[16,128], index: 1, kind: input, shape index: {}]
  %s2 = inlined_call_operand.vmem [shape: s8[16,128], index: 2, kind: input, shape index: {}]
  %s3 = inlined_call_operand.hbm [shape: f32[1,128], index: 3, kind: output, shape index: {0}]
  %s4 = inlined_call_operand.hbm [shape: f32[1,128], index: 4, kind: output, shape index: {1}]
  %5 = xla_tuple %s3, %s4
  %s6 = sld [smem:[#allocation0]]
  $region46: #{tpu_custom_call.1} parent=0
    _
  %s8 = ssub.s32 1, %s6
  %s9 = scalar_select 0, %s8, %s6
  $region1: #{tpu_custom_call.1} parent=0
    #allocation4 [shape = 'u8[8192]{0}', space=vmem, size = 0x2000, scoped, tag = 'input window, operand 0, single buffered']
    #allocation5 [shape = 's32[1]{0}', space=sflag, size = 0x4, scoped, tag = 'scoped memory for tpu_custom_call.1']
    #allocation6 [shape = 's32[1]{0}', space=sflag, size = 0x4, scoped, tag = 'scoped memory for tpu_custom_call.1']
    #allocation7 [shape = 'u8[8192]{0}', space=vmem, size = 0x2000, scoped, tag = 'input window, operand 1, single buffered']
    #allocation8 [shape = 's32[1]{0}', space=sflag, size = 0x4, scoped, tag = 'scoped memory for tpu_custom_call.1']
    #allocation9 [shape = 'u8[512]{0}', space=vmem, size = 0x400, scoped, tag = 'output window, operand 0, single buffered']
    #allocation10 [shape = 'u8[512]{0}', space=vmem, size = 0x400, scoped, tag = 'output window, operand 1, single buffered']
    #allocation11 [shape = 's32[1]{0}', space=sflag, size = 0x4, scoped, tag = 'scoped memory for tpu_custom_call.1']
    %10 = vsyncpa [#allocation5], 0
    %11 = vsyncpa [#allocation8], 0
    %12 = vsyncpa [#allocation6], 0
    %13 = vsyncpa [#allocation11], 0
    // Predicated region
    $region2: #{tpu_custom_call.1} parent=1 // pred_check
      _
    $region3: #{tpu_custom_call.1} parent=1 // pred_check_branch
      %15 = sbr.rel (0) target = $region5
    $region4: #{tpu_custom_call.1} parent=1 // pred_region
      %s16 = sadd.s32 0, 0
      %p17 = scmp.lt.s32.totalorder %s16, 0
      %s18 = scalar_select %p17, %s16, 0
      %s19 = smul.u32 2, %s18
      %s21 = ssub.s32 256, 256
      %22 = vsyncadd [#allocation5], %s21
      %s23 = smul.addr %s19, 128
      %s24 = scalar_lea.hbm %s0, %s23
      %s25 = sshll.u32 [#allocation4], 4
      %s26 = int_to_ptr.vmem [resolvable:$true] %s25
      %31 = dma.hbm_to_vmem [thread:$0]  %s24, 256, %s26, [#allocation5], 128, 128, 8
    $region5: #{tpu_custom_call.1} parent=1 // pred_fallthru
      _
    // Predicated region
    $region6: #{tpu_custom_call.1} parent=1 // pred_check
      _
    $region7: #{tpu_custom_call.1} parent=1 // pred_check_branch
      %33 = sbr.rel (0) target = $region9
    $region8: #{tpu_custom_call.1} parent=1 // pred_region
      %s34 = sadd.s32 0, 0
      %p35 = scmp.lt.s32.totalorder %s34, 0
      %s36 = scalar_select %p35, %s34, 0
      %s37 = smul.u32 2, %s36
      %s39 = ssub.s32 256, 256
      %40 = vsyncadd [#allocation8], %s39
      %s41 = smul.addr %s37, 128
      %s42 = scalar_lea.hbm %s1, %s41
      %s43 = sshll.u32 [#allocation7], 4
      %s44 = int_to_ptr.vmem [resolvable:$true] %s43
      %49 = dma.hbm_to_vmem [thread:$0]  %s42, 256, %s44, [#allocation8], 128, 128, 8
    $region9: #{tpu_custom_call.1} parent=1 // pred_fallthru
      _
    // Predicated region
    $region10: #{tpu_custom_call.1} parent=1 // pred_check
      _
    $region11: #{tpu_custom_call.1} parent=1 // pred_check_branch
      %51 = sbr.rel (0) target = $region13
    $region12: #{tpu_custom_call.1} parent=1 // pred_region
      %s52 = sadd.s32 0, 0
      %p53 = scmp.lt.s32.totalorder %s52, 0
      %s54 = scalar_select %p53, %s52, 0
      %s55 = smul.u32 2, %s54
      %p56 = scmp.lt.s32.totalorder %s55, 1
      %s57 = scalar_select %p56, %s55, 1
      %s58 = smul.addr %s57, 2
      %s59 = scalar_lea.vmem %s2, %s58
      %s60 = sadd.s32 0, 0
      %p61 = scmp.lt.s32.totalorder %s60, 0
      %s62 = scalar_select %p61, %s60, 0
      %s63 = smul.u32 2, %s62
    $region13: #{tpu_custom_call.1} parent=1 // pred_fallthru
      _
    // Predicated region
    $region14: #{tpu_custom_call.1} parent=1 // pred_check
      _
    $region15: #{tpu_custom_call.1} parent=1 // pred_check_branch
      %65 = sbr.rel (0) target = $region17
    $region16: #{tpu_custom_call.1} parent=1 // pred_region
      %66 = dma.done [#allocation5], 256
    $region17: #{tpu_custom_call.1} parent=1 // pred_fallthru
      _
    // Predicated region
    $region18: #{tpu_custom_call.1} parent=1 // pred_check
      _
    $region19: #{tpu_custom_call.1} parent=1 // pred_check_branch
      %68 = sbr.rel (0) target = $region21
    $region20: #{tpu_custom_call.1} parent=1 // pred_region
      %69 = dma.done [#allocation8], 256
    $region21: #{tpu_custom_call.1} parent=1 // pred_fallthru
      _
    %s70 = sadd.s32 0, 0
    %p71 = scmp.lt.s32.totalorder %s70, 0
    %s72 = scalar_select %p71, %s70, 0
    %s73 = smul.u32 2, %s72
    %p74 = scmp.lt.s32.totalorder %s73, 1
    %s75 = scalar_select %p74, %s73, 1
    %s76 = smul.addr %s75, 2
    %s77 = scalar_lea.vmem %s2, %s76
    %s78 = sadd.s32 0, 0
    %p79 = scmp.lt.s32.totalorder %s78, 0
    %s80 = scalar_select %p79, %s78, 0
    %s81 = smul.u32 2, %s80
    %s82 = sadd.s32 0, 0
    %p83 = scmp.lt.s32.totalorder %s82, 0
    %s84 = scalar_select %p83, %s82, 0
    %s85 = smul.u32 2, %s84
    %s86 = sadd.s32 0, 0
    %p87 = scmp.lt.s32.totalorder %s86, 0
    %s88 = scalar_select %p87, %s86, 0
    %s89 = smul.u32 2, %s88
    %p90 = scmp.lt.s32.totalorder %s89, 1
    %s91 = scalar_select %p90, %s89, 1
    %s92 = smul.addr %s91, 2
    %s93 = scalar_lea.vmem %s2, %s92
    %s94 = sadd.s32 0, 0
    %p95 = scmp.lt.s32.totalorder %s94, 0
    %s96 = scalar_select %p95, %s94, 0
    %s97 = smul.u32 2, %s96
    %p100 = scmp.eq.s32.totalorder 0, 0
    // Predicated region
    $region22: #{tpu_custom_call.1} parent=1 // pred_check
      %p101 = pneg %p100
    $region23: #{tpu_custom_call.1} parent=1 // pred_check_branch
      %103 = sbr.rel (%p101) target = $region25
    $region24: #{tpu_custom_call.1} parent=1 // pred_region
      %104 = vst [vmem:[#allocation2] sm:$0xff] 0.0
      %105 = vst [vmem:[#allocation2 + $0x8] sm:$0xff] 0.0
      %106 = vst [vmem:[#allocation3] sm:$0xff] 0.0
      %107 = vst [vmem:[#allocation3 + $0x8] sm:$0xff] 0.0
    $region25: #{tpu_custom_call.1} parent=1 // pred_fallthru
      _
    %v108 = vld [vmem:[%s93] sm:$0x3]
    %v109 = vld [vmem:[%s93 + $0x2] sm:$0x3]
    %vm110 = vnez %v108
    %vm111 = vnez %v109
    %v112 = vld [vmem:[#allocation4] sm:$0xff]
    %v113 = vld [vmem:[#allocation4 + $0x8] sm:$0xff]
    %v114 = vld [vmem:[#allocation7] sm:$0xff]
    %v115 = vld [vmem:[#allocation7 + $0x8] sm:$0xff]
    %v116 = vsub.f32 %v112, %v114
    %v117 = vsub.f32 %v113, %v115
    %v118 = vld [vmem:[#allocation2] sm:$0xff]
    %v119 = vld [vmem:[#allocation2 + $0x8] sm:$0xff]
    %v120 = vmul.f32 %v116, %v116
    %v121 = vmul.f32 %v117, %v117
    %v122 = vsel %vm110, 16843009, 0
    %v123 = vsel %vm111, 16843009, 0
    %v124 = vunpack.c.0.s8 %v122
    %v125 = vunpack.c.0.s8 %v123
    %vm126 = vcmp.ne.s32.totalorder %v124, 0
    %vm127 = vcmp.ne.s32.totalorder %v125, 0
    %v128 = vsel %vm126, %v120, 0.0
    %v129 = vsel %vm127, %v121, 0.0
    %v130 = vadd.f32 %v118, %v128
    %v131 = vadd.f32 %v119, %v129
    %132 = vst [vmem:[#allocation2] sm:$0xff] %v130
    %133 = vst [vmem:[#allocation2 + $0x8] sm:$0xff] %v131
    %v134 = vld [vmem:[#allocation3] sm:$0xff]
    %v135 = vld [vmem:[#allocation3 + $0x8] sm:$0xff]
    %v136 = vsel %vm126, 1, 0
    %v137 = vsel %vm127, 1, 0
    %v138 = vcvt.s32.f32 %v136
    %v139 = vcvt.s32.f32 %v137
    %v140 = vadd.f32 %v134, %v138
    %v141 = vadd.f32 %v135, %v139
    %142 = vst [vmem:[#allocation3] sm:$0xff] %v140
    %143 = vst [vmem:[#allocation3 + $0x8] sm:$0xff] %v141
    // Predicated region
    $region26: #{tpu_custom_call.1} parent=1 // pred_check
      %p144 = pneg %p100
    $region27: #{tpu_custom_call.1} parent=1 // pred_check_branch
      %146 = sbr.rel (%p144) target = $region29
    $region28: #{tpu_custom_call.1} parent=1 // pred_region
      %v147 = vld [vmem:[#allocation2] sm:$0xff]
      %v148 = vld [vmem:[#allocation2 + $0x8] sm:$0xff]
      %v149 = vadd.f32 %v147, %v148
      %150 = vadd.xlane.f32.xlu0 %v149
      %v151 = vpop.xlane.xlu0 %150
      %v152 = vrot.slane %v151, 4
      %v153 = vadd.f32 %v151, %v152
      %v154 = vrot.slane %v153, 2
      %v155 = vadd.f32 %v153, %v154
      %v156 = vrot.slane %v155, 1
      %v157 = vadd.f32 %v155, %v156
      %s158 = vtos %v157
      %v159 = vstv %s158
      %160 = vst [vmem:[#allocation9] sm:$0x1] %v159
      %v161 = vld [vmem:[#allocation3] sm:$0xff]
      %v162 = vld [vmem:[#allocation3 + $0x8] sm:$0xff]
      %v163 = vadd.f32 %v161, %v162
      %164 = vadd.xlane.f32.xlu0 %v163
      %v165 = vpop.xlane.xlu0 %164
      %v166 = vrot.slane %v165, 4
      %v167 = vadd.f32 %v165, %v166
      %v168 = vrot.slane %v167, 2
      %v169 = vadd.f32 %v167, %v168
      %v170 = vrot.slane %v169, 1
      %v171 = vadd.f32 %v169, %v170
      %s172 = vtos %v171
      %v173 = vstv %s172
      %174 = vst [vmem:[#allocation10] sm:$0x1] %v173
    $region29: #{tpu_custom_call.1} parent=1 // pred_fallthru
      _
    // Predicated region
    $region30: #{tpu_custom_call.1} parent=1 // pred_check
      _
    $region31: #{tpu_custom_call.1} parent=1 // pred_check_branch
      %176 = sbr.rel (0) target = $region33
    $region32: #{tpu_custom_call.1} parent=1 // pred_region
      %s178 = ssub.s32 16, 16
      %179 = vsyncadd [#allocation6], %s178
      %s181 = sshll.u32 [#allocation9], 4
      %s182 = int_to_ptr.vmem [resolvable:$true] %s181
      %184 = dma.vmem_to_hbm [thread:$0]  %s182, 16, %s3, [#allocation6]
    $region33: #{tpu_custom_call.1} parent=1 // pred_fallthru
      _
    // Predicated region
    $region34: #{tpu_custom_call.1} parent=1 // pred_check
      _
    $region35: #{tpu_custom_call.1} parent=1 // pred_check_branch
      %186 = sbr.rel (0) target = $region37
    $region36: #{tpu_custom_call.1} parent=1 // pred_region
      %s188 = ssub.s32 16, 16
      %189 = vsyncadd [#allocation11], %s188
      %s191 = sshll.u32 [#allocation10], 4
      %s192 = int_to_ptr.vmem [resolvable:$true] %s191
      %194 = dma.vmem_to_hbm [thread:$0]  %s192, 16, %s4, [#allocation11]
    $region37: #{tpu_custom_call.1} parent=1 // pred_fallthru
      _
    // Predicated region
    $region38: #{tpu_custom_call.1} parent=1 // pred_check
      _
    $region39: #{tpu_custom_call.1} parent=1 // pred_check_branch
      %196 = sbr.rel (0) target = $region41
    $region40: #{tpu_custom_call.1} parent=1 // pred_region
      %197 = dma.done [#allocation6], 16
    $region41: #{tpu_custom_call.1} parent=1 // pred_fallthru
      _
    // Predicated region
    $region42: #{tpu_custom_call.1} parent=1 // pred_check
      _
    $region43: #{tpu_custom_call.1} parent=1 // pred_check_branch
      %199 = sbr.rel (0) target = $region45
    $region44: #{tpu_custom_call.1} parent=1 // pred_region
      %200 = dma.done [#allocation11], 16
    $region45: #{tpu_custom_call.1} parent=1 // pred_fallthru
      _
    %201 = vsyncpa [#allocation5], 1
    %202 = vsyncpa [#allocation8], 1
    %203 = vsyncpa [#allocation6], 1
    %204 = vsyncpa [#allocation11], 1

</llo_original>
